<compile_context>
chip_gen: v7x
topology: tpu7x:2x2x1
jax: 0.10.0
libtpu: 0.0.40
codegen_flags: <defaults>
</compile_context>

<pallas_src>
import jax
import jax.numpy as jnp
import numpy as np
from jax.experimental import pallas as pl
from jax.experimental.pallas import tpu as pltpu


# ----------------------------------------------------------------------------
# Helpers
# ----------------------------------------------------------------------------
def _full_block_spec(shape):
    """Whole-array block for a grid=(1,) pallas_call."""
    nd = len(shape)
    return pl.BlockSpec(shape, lambda i, _nd=nd: (0,) * _nd)


def _pick_tile(dim, pref, quantum):
    """Largest power-of-two tile <= pref (and >= quantum) dividing dim, else full dim."""
    t = pref
    while t >= quantum:
        if dim % t == 0:
            return t
        t //= 2
    return dim


# ----------------------------------------------------------------------------
# Dense (nn.Linear-style) kernel: tiled (rows x cols) matmul + bias.
# Also used to hoist the GRU layer-0 input projection out of the recurrence.
# ----------------------------------------------------------------------------
def _dense_kernel(x_ref, w_ref, b_ref, o_ref):
    o_ref[...] = (jnp.dot(x_ref[...], w_ref[...],
                          preferred_element_type=jnp.float32)
                  + b_ref[...]).astype(o_ref.dtype)


def dense_pallas(x, w, b):
    N, K = x.shape
    V = w.shape[1]
    tm = _pick_tile(N, 256, 8)     # row tile (sublane-aligned)
    tv = _pick_tile(V, 512, 128)   # col tile (lane-dense when possible)
    b2 = b.reshape(1, -1)
    return pl.pallas_call(
        _dense_kernel,
        out_shape=jax.ShapeDtypeStruct((N, V), jnp.float32),
        grid_spec=pltpu.PrefetchScalarGridSpec(
            num_scalar_prefetch=0,
            grid=(N // tm, V // tv),
            in_specs=[
                pl.BlockSpec((tm, K), lambda i, j: (i, 0)),
                pl.BlockSpec((K, tv), lambda i, j: (0, j)),
                pl.BlockSpec((1, tv), lambda i, j: (0, j)),
            ],
            out_specs=pl.BlockSpec((tm, tv), lambda i, j: (i, j)),
        ),
        compiler_params=pltpu.CompilerParams(
            dimension_semantics=("parallel", "parallel"),
            vmem_limit_bytes=32 * 1024 * 1024),   # explicit: portable to v7x
    )(x, w, b2)


# ----------------------------------------------------------------------------
# Fused multi-layer GRU stack kernel.
#   gi0_ref : (T, B, 3H)  precomputed layer-0 input projection (incl. biases
#                         and, for the decoder, the folded context term)
#   h0_ref  : (L, B, H)   initial hidden state per layer
#   whh[l]  : (H, 3H)     recurrent weights (pre-transposed)
#   bhh[l]  : (1, 3H)
#   wih[l-1]: (H, 3H)     input weights for layers l>=1 (pre-transposed)
#   bih[l-1]: (1, 3H)
# Outputs: optional out (T, B, H) = last-layer sequence; hT (L, B, H).
# PyTorch gate order [r, z, n]; n-gate uses r * (h @ W_hn + b_hn).
# ----------------------------------------------------------------------------
def _make_gru_stack_kernel(L, T, H, with_out):
    def kernel(*refs):
        pos = 0
        gi0_ref = refs[pos]; pos += 1
        h0_ref = refs[pos]; pos += 1
        whh = refs[pos:pos + L]; pos += L
        bhh = refs[pos:pos + L]; pos += L
        wih = refs[pos:pos + (L - 1)]; pos += (L - 1)
        bih = refs[pos:pos + (L - 1)]; pos += (L - 1)
        if with_out:
            out_ref = refs[pos]; pos += 1
        else:
            out_ref = None
        hT_ref = refs[pos]; pos += 1
        act_sc = refs[pos]   # (T, B, H)  inter-layer activations
        gi_sc = refs[pos + 1]  # (T, B, 3H) per-layer input projections (l>=1)
        h_sc = refs[pos + 2]   # (B, H)    carried hidden state

        for l in range(L):
            if l == 0:
                gi_read = gi0_ref                       # hoisted, precomputed
            else:
                # One big MXU matmul over the whole previous-layer sequence.
                prev = act_sc[...].reshape(T * (act_sc.shape[1]), H)
                gi = (jnp.dot(prev, wih[l - 1][...],
                              preferred_element_type=jnp.float32)
                      + bih[l - 1][...])
                gi_sc[...] = gi.reshape(gi_sc.shape)
                gi_read = gi_sc

            h_sc[...] = h0_ref[l]
            w_hh = whh[l][...]                          # weights stay resident
            b_hh = bhh[l][...]
            last = (l == L - 1)

            def step(t, carry, gi_read=gi_read, w_hh=w_hh, b_hh=b_hh, last=last):
                h = h_sc[...]                           # (B, H)
                gi_t = gi_read[t]                       # (B, 3H)
                gh = jnp.dot(h, w_hh,
                             preferred_element_type=jnp.float32) + b_hh
                r = jax.nn.sigmoid(gi_t[:, 0:H] + gh[:, 0:H])
                z = jax.nn.sigmoid(gi_t[:, H:2 * H] + gh[:, H:2 * H])
                n = jnp.tanh(gi_t[:, 2 * H:3 * H] + r * gh[:, 2 * H:3 * H])
                h_new = (1.0 - z) * n + z * h
                h_sc[...] = h_new
                if last:
                    if with_out:
                        out_ref[t] = h_new.astype(out_ref.dtype)
                else:
                    act_sc[t] = h_new
                return carry

            jax.lax.fori_loop(0, T, step, 0, unroll=(T <= 16))
            hT_ref[l] = h_sc[...].astype(hT_ref.dtype)

    return kernel


def gru_stack_pallas(gi0, h0, whh_list, bhh_list, wih_rest, bih_rest,
                     need_out=True):
    T, B, G = gi0.shape
    L, _, H = h0.shape
    assert G == 3 * H and len(whh_list) == L and len(wih_rest) == L - 1

    bhh_list = [b.reshape(1, 3 * H) for b in bhh_list]
    bih_rest = [b.reshape(1, 3 * H) for b in bih_rest]

    inputs = [gi0, h0] + list(whh_list) + bhh_list + list(wih_rest) + bih_rest
    in_specs = [_full_block_spec(a.shape) for a in inputs]

    out_shapes, out_specs = [], []
    if need_out:
        out_shapes.append(jax.ShapeDtypeStruct((T, B, H), jnp.float32))
        out_specs.append(_full_block_spec((T, B, H)))
    out_shapes.append(jax.ShapeDtypeStruct((L, B, H), jnp.float32))
    out_specs.append(_full_block_spec((L, B, H)))

    res = pl.pallas_call(
        _make_gru_stack_kernel(L, T, H, need_out),
        out_shape=tuple(out_shapes),
        grid_spec=pltpu.PrefetchScalarGridSpec(
            num_scalar_prefetch=0,
            grid=(1,),
            in_specs=in_specs,
            out_specs=tuple(out_specs),
            scratch_shapes=[
                pltpu.VMEM((T, B, H), jnp.float32),       # inter-layer acts
                pltpu.VMEM((T, B, 3 * H), jnp.float32),   # layer-l projections
                pltpu.VMEM((B, H), jnp.float32),          # hidden carry
            ],
        ),
        compiler_params=pltpu.CompilerParams(
            dimension_semantics=("arbitrary",)),
    )(*inputs)

    if need_out:
        return res[0], res[1]
    return res[0]


# ----------------------------------------------------------------------------
# EncoderDecoder forward (Pallas hot path; gathers / transposes are glue).
# ----------------------------------------------------------------------------
def encoder_decoder_forward(params, enc_X, dec_X):
    B = enc_X.shape[0]
    enc_gru = params["enc_gru"]
    dec_gru = params["dec_gru"]
    L = len(enc_gru)
    H = enc_gru[0][1].shape[0]
    E = params["enc_emb"].shape[1]

    # ---------------- Seq2SeqEncoder ----------------
    emb_e = jnp.take(params["enc_emb"], enc_X, axis=0)       # (B, Ts, E)
    x = jnp.transpose(emb_e, (1, 0, 2))                       # (Ts, B, E)
    Ts = x.shape[0]

    # layer-0 input projection hoisted out of the recurrence (one MXU matmul)
    w_ih0_e, _, b_ih0_e, _ = enc_gru[0]
    gi0_e = dense_pallas(x.reshape(Ts * B, E), w_ih0_e,
                         b_ih0_e).reshape(Ts, B, 3 * H)

    h0 = jnp.zeros((L, B, H), jnp.float32)
    enc_state = gru_stack_pallas(
        gi0_e, h0,
        whh_list=[p[1] for p in enc_gru],
        bhh_list=[p[3] for p in enc_gru],
        wih_rest=[enc_gru[l][0] for l in range(1, L)],
        bih_rest=[enc_gru[l][2] for l in range(1, L)],
        need_out=False)                                       # (L, B, H)

    # ---------------- Seq2SeqDecoder ----------------
    emb_d = jnp.take(params["dec_emb"], dec_X, axis=0)        # (B, Td, E)
    xd = jnp.transpose(emb_d, (1, 0, 2))                      # (Td, B, E)
    Td = xd.shape[0]

    # Context (= enc_state[-1]) is time-invariant: split W_ih0 into emb/ctx
    # halves and fold the one-time ctx @ W_ctx into the layer-0 projection,
    # instead of broadcasting + concatenating a (Td, B, E+H) tensor.
    w_ih0_d, _, b_ih0_d, _ = dec_gru[0]
    w_emb, w_ctx = w_ih0_d[:E], w_ih0_d[E:]
    ctx_bias = enc_state[-1] @ w_ctx                          # (B, 3H), once
    gi0_d = (dense_pallas(xd.reshape(Td * B, E), w_emb, b_ih0_d)
             .reshape(Td, B, 3 * H) + ctx_bias[None, :, :])

    dec_out, dec_state = gru_stack_pallas(
        gi0_d, enc_state,
        whh_list=[p[1] for p in dec_gru],
        bhh_list=[p[3] for p in dec_gru],
        wih_rest=[dec_gru[l][0] for l in range(1, L)],
        bih_rest=[dec_gru[l][2] for l in range(1, L)],
        need_out=True)                                        # (Td,B,H),(L,B,H)

    V = params["dec_W"].shape[1]
    logits = dense_pallas(dec_out.reshape(Td * B, H),
                          params["dec_W"], params["dec_b"]).reshape(Td, B, V)
    return jnp.transpose(logits, (1, 0, 2)), dec_state        # (B,Td,V),(L,B,H)


# ----------------------------------------------------------------------------
# Pure-JAX reference (lax.scan GRU, original concat formulation).
# ----------------------------------------------------------------------------
def _gru_ref(x_seq, h0_layers, layer_params):
    inp = x_seq
    finals = []
    for h0, (w_ih, w_hh, b_ih, b_hh) in zip(h0_layers, layer_params):
        H = h0.shape[-1]

        def step(h, x, w_ih=w_ih, w_hh=w_hh, b_ih=b_ih, b_hh=b_hh, H=H):
            gi = x @ w_ih + b_ih
            gh = h @ w_hh + b_hh
            r = jax.nn.sigmoid(gi[:, :H] + gh[:, :H])
            z = jax.nn.sigmoid(gi[:, H:2 * H] + gh[:, H:2 * H])
            n = jnp.tanh(gi[:, 2 * H:] + r * gh[:, 2 * H:])
            h_new = (1.0 - z) * n + z * h
            return h_new, h_new

        hT, out = jax.lax.scan(step, h0, inp)
        finals.append(hT)
        inp = out
    return inp, jnp.stack(finals, axis=0)


def _forward_ref(params, enc_X, dec_X):
    B = enc_X.shape[0]
    H = params["num_hiddens"]
    L = len(params["enc_gru"])
    x = jnp.transpose(jnp.take(params["enc_emb"], enc_X, axis=0), (1, 0, 2))
    h0 = [jnp.zeros((B, H), jnp.float32) for _ in range(L)]
    _, enc_state = _gru_ref(x, h0, params["enc_gru"])
    xd = jnp.transpose(jnp.take(params["dec_emb"], dec_X, axis=0), (1, 0, 2))
    Td = xd.shape[0]
    xd = jnp.concatenate(
        [xd, jnp.broadcast_to(enc_state[-1], (Td, B, H))], axis=2)
    dec_h0 = [enc_state[i] for i in range(L)]
    dec_out, dec_state = _gru_ref(xd, dec_h0, params["dec_gru"])
    logits = dec_out @ params["dec_W"] + params["dec_b"]
    return jnp.transpose(logits, (1, 0, 2)), dec_state


# ----------------------------------------------------------------------------
# Deterministic parameter init (shapes implied by the PyTorch __init__).
# ----------------------------------------------------------------------------
def init_params(key, src_vocab, tgt_vocab, embed_size, num_hiddens, num_layers):
    k = 1.0 / np.sqrt(num_hiddens)
    keys = jax.random.split(key, 64)
    ki = iter(keys)

    def uni(shape):
        return jax.random.uniform(next(ki), shape, jnp.float32, -k, k)

    def gru_params(input_size, layers):
        ps = []
        for l in range(layers):
            isz = input_size if l == 0 else num_hiddens
            ps.append((uni((isz, 3 * num_hiddens)),          # W_ih^T
                       uni((num_hiddens, 3 * num_hiddens)),  # W_hh^T
                       uni((3 * num_hiddens,)),               # b_ih
                       uni((3 * num_hiddens,))))              # b_hh
        return ps

    return {
        "num_hiddens": num_hiddens,
        "enc_emb": jax.random.normal(next(ki), (src_vocab, embed_size), jnp.float32),
        "dec_emb": jax.random.normal(next(ki), (tgt_vocab, embed_size), jnp.float32),
        "enc_gru": gru_params(embed_size, num_layers),
        "dec_gru": gru_params(embed_size + num_hiddens, num_layers),
        "dec_W": uni((num_hiddens, tgt_vocab)),
        "dec_b": uni((tgt_vocab,)),
    }


if __name__ == "__main__":
    # small, module-consistent shapes
    B, T_SRC, T_TGT = 2, 8, 8
    SRC_VOCAB, TGT_VOCAB = 40, 48
    EMBED, HIDDEN, LAYERS = 16, 32, 2

    root = jax.random.PRNGKey(0)
    kp, ke, kd = jax.random.split(root, 3)
    params = init_params(kp, SRC_VOCAB, TGT_VOCAB, EMBED, HIDDEN, LAYERS)
    enc_X = jax.random.randint(ke, (B, T_SRC), 0, SRC_VOCAB, jnp.int32)
    dec_X = jax.random.randint(kd, (B, T_TGT), 0, TGT_VOCAB, jnp.int32)

    out, state = encoder_decoder_forward(params, enc_X, dec_X)
    out = jax.block_until_ready(out)
    state = jax.block_until_ready(state)

    # sanity-check against pure-JAX reference
    ref_out, ref_state = _forward_ref(params, enc_X, dec_X)
    assert out.shape == (B, T_TGT, TGT_VOCAB)
    assert state.shape == (LAYERS, B, HIDDEN)
    np.testing.assert_allclose(np.asarray(out), np.asarray(ref_out),
                               rtol=5e-3, atol=5e-3)
    np.testing.assert_allclose(np.asarray(state), np.asarray(ref_state),
                               rtol=5e-3, atol=5e-3)

    print("KERNEL_OK")
</pallas_src>

<mosaic_0001>
module attributes {stable_mosaic.version = 11 : i64} {
  func.func @_dense_kernel(%arg0: i32, %arg1: i32, %arg2: memref<16x16xf32, #tpu.memory_space<vmem>>, %arg3: memref<16x96xf32, #tpu.memory_space<vmem>>, %arg4: memref<1x96xf32, #tpu.memory_space<vmem>>, %arg5: memref<16x96xf32, #tpu.memory_space<vmem>>) attributes {dimension_semantics = [#tpu.dimension_semantics<parallel>, #tpu.dimension_semantics<parallel>], iteration_bounds = array<i64: 1, 1>, scalar_prefetch = 0 : i64, scratch_operands = 0 : i64, tpu.core_type = #tpu.core_type<tc>, window_params = [{transform_indices = @transform_0, window_bounds = array<i64: 16, 16>}, {transform_indices = @transform_1, window_bounds = array<i64: 16, 96>}, {transform_indices = @transform_2, window_bounds = array<i64: 1, 96>}, {transform_indices = @transform_3, window_bounds = array<i64: 16, 96>}]} {
    %c0 = arith.constant 0 : index
    %c0_0 = arith.constant 0 : index
    %0 = vector.load %arg2[%c0, %c0_0] : memref<16x16xf32, #tpu.memory_space<vmem>>, vector<16x16xf32>
    %c0_1 = arith.constant 0 : index
    %c0_2 = arith.constant 0 : index
    %1 = vector.load %arg3[%c0_1, %c0_2] : memref<16x96xf32, #tpu.memory_space<vmem>>, vector<16x96xf32>
    %cst = arith.constant dense<0.000000e+00> : vector<16x96xf32>
    %2 = tpu.matmul %0, %1, %cst {dimension_numbers = #tpu.dot_dimension_numbers<[1], [0], [0], [1], [0, 0, 1, 1], [], []>} : vector<16x16xf32>, vector<16x96xf32>, vector<16x96xf32> -> vector<16x96xf32>
    %c0_3 = arith.constant 0 : index
    %c0_4 = arith.constant 0 : index
    %3 = vector.load %arg4[%c0_3, %c0_4] : memref<1x96xf32, #tpu.memory_space<vmem>>, vector<1x96xf32>
    %4 = vector.broadcast %3 : vector<1x96xf32> to vector<16x96xf32>
    %5 = arith.addf %2, %4 : vector<16x96xf32>
    %c0_5 = arith.constant 0 : index
    %c0_6 = arith.constant 0 : index
    %6 = vector.load %arg5[%c0_5, %c0_6] : memref<16x96xf32, #tpu.memory_space<vmem>>, vector<16x96xf32>
    tpu.vector_store %arg5[%c0_5, %c0_6], %5 {strides = array<i32>} : memref<16x96xf32, #tpu.memory_space<vmem>>, vector<16x96xf32>,
    return
  }
  func.func @transform_0(%arg0: i32, %arg1: i32) -> (i32, i32) {
    %c0_i32 = arith.constant 0 : i32
    %c0_i32_0 = arith.constant 0 : i32
    return %arg0, %c0_i32 : i32, i32
  }
  func.func @transform_1(%arg0: i32, %arg1: i32) -> (i32, i32) {
    %c0_i32 = arith.constant 0 : i32
    %c0_i32_0 = arith.constant 0 : i32
    return %c0_i32, %arg1 : i32, i32
  }
  func.func @transform_2(%arg0: i32, %arg1: i32) -> (i32, i32) {
    %c0_i32 = arith.constant 0 : i32
    %c0_i32_0 = arith.constant 0 : i32
    return %c0_i32, %arg1 : i32, i32
  }
  func.func @transform_3(%arg0: i32, %arg1: i32) -> (i32, i32) {
    %c0_i32 = arith.constant 0 : i32
    return %arg0, %arg1 : i32, i32
  }
}

</mosaic_0001>

<llo_original>
// kernel: tpu_custom_call.1
$region0: #{tpu_custom_call.1}
  #allocation0 [shape = 'u32[]', space=smem, size = 0x4, offset = 0x4, fixed_abs, tag = 'smem constant byte address 0x4 - core index']
  #allocation1 [shape = 'u32[144,128]{1,0:T(1,128)}', space=vmem, size = 0x12000, scoped, tag = 'internal scratch']
  %s0 = inlined_call_operand.hbm [shape: f32[16,16], index: 0, kind: input, shape index: {}]
  %s1 = inlined_call_operand.hbm [shape: f32[16,96], index: 1, kind: input, shape index: {}]
  %s2 = inlined_call_operand.vmem [shape: f32[1,96], index: 2, kind: input, shape index: {}]
  %s3 = inlined_call_operand.hbm [shape: f32[16,96], index: 3, kind: output, shape index: {}]
  %s4 = sld [smem:[#allocation0]]
  $region30: #{tpu_custom_call.1} parent=0
    _
  %s6 = ssub.s32 1, %s4
  %s7 = scalar_select 0, %s6, %s4
  $region1: #{tpu_custom_call.1} parent=0
    #allocation2 [shape = 'u8[8192]{0}', space=vmem, size = 0x2000, scoped, tag = 'input window, operand 0, single buffered']
    #allocation3 [shape = 's32[1]{0}', space=sflag, size = 0x4, scoped, tag = 'scoped memory for tpu_custom_call.1']
    #allocation4 [shape = 's32[1]{0}', space=sflag, size = 0x4, scoped, tag = 'scoped memory for tpu_custom_call.1']
    #allocation5 [shape = 'u8[8192]{0}', space=vmem, size = 0x2000, scoped, tag = 'input window, operand 1, single buffered']
    #allocation6 [shape = 's32[1]{0}', space=sflag, size = 0x4, scoped, tag = 'scoped memory for tpu_custom_call.1']
    #allocation7 [shape = 'u8[8192]{0}', space=vmem, size = 0x2000, scoped, tag = 'output window, operand 0, single buffered']
    %8 = vsyncpa [#allocation3], 0
    %9 = vsyncpa [#allocation6], 0
    %10 = vsyncpa [#allocation4], 0
    // Predicated region
    $region2: #{tpu_custom_call.1} parent=1 // pred_check
      _
    $region3: #{tpu_custom_call.1} parent=1 // pred_check_branch
      %12 = sbr.rel (0) target = $region5
    $region4: #{tpu_custom_call.1} parent=1 // pred_region
      %s14 = ssub.s32 256, 256
      %15 = vsyncadd [#allocation3], %s14
      %s16 = sshll.u32 [#allocation2], 4
      %s17 = int_to_ptr.vmem [resolvable:$true] %s16
      %22 = dma.hbm_to_vmem [thread:$0]  %s0, 256, %s17, [#allocation3], 128, 128, 8
    $region5: #{tpu_custom_call.1} parent=1 // pred_fallthru
      _
    // Predicated region
    $region6: #{tpu_custom_call.1} parent=1 // pred_check
      _
    $region7: #{tpu_custom_call.1} parent=1 // pred_check_branch
      %24 = sbr.rel (0) target = $region9
    $region8: #{tpu_custom_call.1} parent=1 // pred_region
      %s26 = ssub.s32 256, 256
      %27 = vsyncadd [#allocation6], %s26
      %s28 = sshll.u32 [#allocation5], 4
      %s29 = int_to_ptr.vmem [resolvable:$true] %s28
      %34 = dma.hbm_to_vmem [thread:$0]  %s1, 256, %s29, [#allocation6], 128, 128, 8
    $region9: #{tpu_custom_call.1} parent=1 // pred_fallthru
      _
    // Predicated region
    $region10: #{tpu_custom_call.1} parent=1 // pred_check
      _
    $region11: #{tpu_custom_call.1} parent=1 // pred_check_branch
      %36 = sbr.rel (0) target = $region13
    $region12: #{tpu_custom_call.1} parent=1 // pred_region
      _
    $region13: #{tpu_custom_call.1} parent=1 // pred_fallthru
      _
    // Predicated region
    $region14: #{tpu_custom_call.1} parent=1 // pred_check
      _
    $region15: #{tpu_custom_call.1} parent=1 // pred_check_branch
      %38 = sbr.rel (0) target = $region17
    $region16: #{tpu_custom_call.1} parent=1 // pred_region
      %39 = dma.done [#allocation3], 256
    $region17: #{tpu_custom_call.1} parent=1 // pred_fallthru
      _
    // Predicated region
    $region18: #{tpu_custom_call.1} parent=1 // pred_check
      _
    $region19: #{tpu_custom_call.1} parent=1 // pred_check_branch
      %41 = sbr.rel (0) target = $region21
    $region20: #{tpu_custom_call.1} parent=1 // pred_region
      %42 = dma.done [#allocation6], 256
    $region21: #{tpu_custom_call.1} parent=1 // pred_fallthru
      _
    %v43 = vld [vmem:[#allocation2] sm:$0xff]
    %v44 = vld [vmem:[#allocation2 + $0x8] sm:$0xff]
    %v45 = vld [vmem:[#allocation5] sm:$0xff]
    %v46 = vld [vmem:[#allocation5 + $0x8] sm:$0xff]
    %v47 = vld [vmem:[%s2] sm:$0x1]
    %v49 = vlaneseq
    %v50 = vshrl.u32 %v49, 7
    %v51 = vsub.s32 0, %v50
    %v52 = vrot.slane %v47, %v51
    %vm54 = vcmask 130048
    %v56 = vsel %vm54, %v43, 0
    %v59 = vsel %vm54, %v44, 0
    %61 = vmatprep.subr.mxu0 0.0
    %62 = vmatpush1.msra.mxu0 %v45
    %63 = vmatprep.subr.mxu0 0.0
    %64 = vmatpush1.msra.mxu0 %v46
    %65 = vmatprep.subr.mxu0 0.0
    %66 = vmatpush1.msra.mxu0 0.0
    %67 = vmatprep.subr.mxu0 0.0
    %68 = vmatpush1.msra.mxu0 0.0
    %69 = vmatprep.subr.mxu0 0.0
    %70 = vmatpush1.msra.mxu0 0.0
    %71 = vmatprep.subr.mxu0 0.0
    %72 = vmatpush1.msra.mxu0 0.0
    %73 = vmatprep.subr.mxu0 0.0
    %74 = vmatpush1.msra.mxu0 0.0
    %75 = vmatprep.subr.mxu0 0.0
    %76 = vmatpush1.msra.mxu0 0.0
    %77 = vmatprep.subr.mxu0 0.0
    %78 = vmatpush1.msra.mxu0 0.0
    %79 = vmatprep.subr.mxu0 0.0
    %80 = vmatpush1.msra.mxu0 0.0
    %81 = vmatprep.subr.mxu0 0.0
    %82 = vmatpush1.msra.mxu0 0.0
    %83 = vmatprep.subr.mxu0 0.0
    %84 = vmatpush1.msra.mxu0 0.0
    %85 = vmatprep.subr.mxu0 0.0
    %86 = vmatpush1.msra.mxu0 0.0
    %87 = vmatprep.subr.mxu0 0.0
    %88 = vmatpush1.msra.mxu0 0.0
    %89 = vmatprep.subr.mxu0 0.0
    %90 = vmatpush1.msra.mxu0 0.0
    %91 = vmatprep.subr.mxu0 0.0
    %92 = vmatpush1.msra.mxu0 0.0
    %93 = vmatprep.subr.mxu0 0.0
    %94 = vmatpush1.msra.mxu0 0.0
    %95 = vmatprep.subr.mxu0 0.0
    %96 = vmatpush1.msra.mxu0 0.0
    %97 = vmatprep.subr.mxu0 0.0
    %98 = vmatpush1.msra.mxu0 0.0
    %99 = vmatprep.subr.mxu0 0.0
    %100 = vmatpush1.msra.mxu0 0.0
    %101 = vmatprep.subr.mxu0 0.0
    %102 = vmatpush1.msra.mxu0 0.0
    %103 = vmatprep.subr.mxu0 0.0
    %104 = vmatpush1.msra.mxu0 0.0
    %105 = vmatprep.subr.mxu0 0.0
    %106 = vmatpush1.msra.mxu0 0.0
    %107 = vmatprep.subr.mxu0 0.0
    %108 = vmatpush1.msra.mxu0 0.0
    %109 = vmatprep.subr.mxu0 0.0
    %110 = vmatpush1.msra.mxu0 0.0
    %111 = vmatprep.subr.mxu0 0.0
    %112 = vmatpush1.msra.mxu0 0.0
    %113 = vmatprep.subr.mxu0 0.0
    %114 = vmatpush1.msra.mxu0 0.0
    %115 = vmatprep.subr.mxu0 0.0
    %116 = vmatpush1.msra.mxu0 0.0
    %117 = vmatprep.subr.mxu0 0.0
    %118 = vmatpush1.msra.mxu0 0.0
    %119 = vmatprep.subr.mxu0 0.0
    %120 = vmatpush1.msra.mxu0 0.0
    %121 = vmatprep.subr.mxu0 0.0
    %122 = vmatpush1.msra.mxu0 0.0
    %123 = vmatprep.subr.mxu0 0.0
    %124 = vmatpush1.msra.mxu0 0.0
    %125 = vmatprep.mubr.f32.mxu0 0.0
    %126 = vmatmul.mubr.f32.gmra.mrb[0].mxu0 %v56
    %v127 = vpop.f32.mrb[0].mxu0
    %v128 = vadd.f32 %v52, %v127
    %v129 = vpop.f32.mrb[0].mxu0
    %130 = vmatprep.mubr.f32.mxu0 0.0
    %131 = vmatmul.mubr.f32.gmra.mrb[0].mxu0 %v59
    %v132 = vpop.f32.mrb[0].mxu0
    %v133 = vadd.f32 %v52, %v132
    %v134 = vpop.f32.mrb[0].mxu0
    %135 = vdwg.mxu0
    %vm136 = vcmask 785408
    %137 = vst.msk [vmem:[#allocation7] sm:$0xff] %vm136, %v128
    %138 = vst.msk [vmem:[#allocation7 + $0x8] sm:$0xff] %vm136, %v133
    // Predicated region
    $region22: #{tpu_custom_call.1} parent=1 // pred_check
      _
    $region23: #{tpu_custom_call.1} parent=1 // pred_check_branch
      %140 = sbr.rel (0) target = $region25
    $region24: #{tpu_custom_call.1} parent=1 // pred_region
      %s142 = ssub.s32 256, 256
      %143 = vsyncadd [#allocation4], %s142
      %s144 = sshll.u32 [#allocation7], 4
      %s145 = int_to_ptr.vmem [resolvable:$true] %s144
      %150 = dma.vmem_to_hbm [thread:$0]  %s145, 256, %s3, [#allocation4], 128, 128, 8
    $region25: #{tpu_custom_call.1} parent=1 // pred_fallthru
      _
    // Predicated region
    $region26: #{tpu_custom_call.1} parent=1 // pred_check
      _
    $region27: #{tpu_custom_call.1} parent=1 // pred_check_branch
      %152 = sbr.rel (0) target = $region29
    $region28: #{tpu_custom_call.1} parent=1 // pred_region
      %153 = dma.done [#allocation4], 256
    $region29: #{tpu_custom_call.1} parent=1 // pred_fallthru
      _
    %154 = vsyncpa [#allocation3], 1
    %155 = vsyncpa [#allocation6], 1
    %156 = vsyncpa [#allocation4], 1

</llo_original>
